<compile_context>
chip_gen: v7x
topology: tpu7x:2x2x1
jax: 0.10.0
libtpu: 0.0.40
codegen_flags: <defaults>
</compile_context>

<pallas_src>
import functools

import jax
import jax.numpy as jnp
from jax.experimental import pallas as pl
from jax.experimental.pallas import tpu as pltpu

EPS = 1e-5                       # nn.LayerNorm default
_INV_SQRT2 = 0.7071067811865476  # 1/sqrt(2) for exact-erf GELU (torch.nn.GELU default)
_SUB = 8                         # f32 sublane count; partial sums kept as (tb, _SUB, D)


def _regression_head_kernel(x_ref, g_ref, beta_ref, w1_ref, b1_ref, w2_ref, b2_ref,
                            o_ref, acc_ref, *, inv_n):
    n = pl.program_id(1)

    # ---- init accumulator at the start of each batch tile's sequence sweep ----
    @pl.when(n == 0)
    def _():
        acc_ref[...] = jnp.zeros_like(acc_ref)

    # ---- streaming pooling: pure-VPU partial sums, cross-sublane reduce deferred ----
    tb, tn, d = x_ref.shape
    x = x_ref[...].reshape(tb, tn // _SUB, _SUB, d)
    acc_ref[...] += jnp.sum(x, axis=1, dtype=jnp.float32)               # (tb, _SUB, D)

    # ---- epilogue on the last sequence tile: reduce -> LN -> Linear -> GELU -> Linear ----
    @pl.when(n == pl.num_programs(1) - 1)
    def _():
        pooled = jnp.sum(acc_ref[...], axis=1) * jnp.float32(inv_n)      # (tb, D) mean over seq

        # LayerNorm over last dim (biased variance, eps=1e-5, matches torch)
        mu = jnp.mean(pooled, axis=-1, keepdims=True)
        var = jnp.mean((pooled - mu) ** 2, axis=-1, keepdims=True)
        xn = (pooled - mu) * jax.lax.rsqrt(var + EPS)
        xn = xn * g_ref[...] + beta_ref[...]                             # (tb, D)

        # Linear(D -> H) on the MXU
        h = jnp.dot(xn, w1_ref[...], preferred_element_type=jnp.float32) + b1_ref[...]

        # GELU, exact erf form (torch.nn.GELU default)
        h = 0.5 * h * (1.0 + jax.lax.erf(h * jnp.float32(_INV_SQRT2)))

        # Linear(H -> 1) as VPU multiply + cross-lane reduce (avoids 1-wide MXU matmul)
        y = jnp.sum(h * w2_ref[...], axis=-1, keepdims=True) + b2_ref[...]   # (tb, 1)

        # lane-dense writeback: batch goes on the lane axis of the (1, 1, tb) output block
        o_ref[...] = y.reshape(1, 1, tb).astype(o_ref.dtype)


def _pick_batch_tile(b):
    """Return (tb, b_pad): multiple-of-8 tb (<=128), preferring >=2 batch tiles."""
    if b < _SUB:
        return b, b  # tiny batch: padding to 8 would multiply HBM traffic on a mem-bound kernel
    b_pad = -(-b // _SUB) * _SUB
    divs = [t for t in range(_SUB, min(b_pad, 128) + 1, _SUB) if b_pad % t == 0]
    pref = [t for t in divs if b_pad // t >= 2]   # keep the "parallel" axis shardable (v7x 2 TCs)
    tb = max(pref) if pref else max(divs)
    return tb, b_pad


def _pick_seq_tile(tb, n_pad, d, itemsize, target_bytes, pack):
    """Largest divisor of n_pad that is a multiple of `pack` and fits the per-buffer budget."""
    cands = [t for t in range(pack, n_pad + 1, pack) if n_pad % t == 0]
    fitting = [t for t in cands if tb * t * d * itemsize <= target_bytes]
    return max(fitting) if fitting else pack      # never a full-N blowup: pack always divides n_pad


def regression_head(x, gamma, beta, w1, b1, w2, b2, *,
                    seq_tile=None, seq_tile_bytes=8 << 20):
    """x: (B, N, D). Weights in (in, out) layout: w1 (D, H), w2 (H, 1). Returns (B,) float32."""
    B, N, D = x.shape
    H = w1.shape[1]
    itemsize = jnp.dtype(x.dtype).itemsize
    pack = {4: 8, 2: 16, 1: 32}.get(itemsize, 8)   # sublane packing per dtype width

    tb, b_pad = _pick_batch_tile(B)
    n_pad = -(-N // pack) * pack
    if seq_tile is None:
        tn = _pick_seq_tile(tb, n_pad, D, itemsize, seq_tile_bytes, pack)
    else:
        assert seq_tile % pack == 0 and n_pad % seq_tile == 0, (seq_tile, n_pad, pack)
        tn = seq_tile

    if (b_pad, n_pad) != (B, N):
        # Zero pad: padded batch rows are sliced away below; zero sequence rows do not change
        # the pooled sum (we divide by the true N).
        x = jnp.pad(x, ((0, b_pad - B), (0, n_pad - N), (0, 0)))

    nb = b_pad // tb
    grid = (nb, n_pad // tn)

    # small params as 2-D rows for clean TPU layouts; w2 as a (1, H) row for the VPU reduce
    gamma2 = gamma.reshape(1, D)
    beta2 = beta.reshape(1, D)
    b1_2 = b1.reshape(1, H)
    w2_row = w2.reshape(1, H)
    b2_2 = b2.reshape(1, 1)

    cost = pl.CostEstimate(
        flops=int(b_pad * n_pad * D + 2 * b_pad * D * H + 2 * b_pad * H + 10 * b_pad * D),
        transcendentals=int(b_pad * H),
        bytes_accessed=int(b_pad * n_pad * D * itemsize
                           + (D * H + 2 * D + 2 * H + 1) * 4
                           + b_pad * 4),
    )

    kernel = functools.partial(_regression_head_kernel, inv_n=1.0 / N)

    out = pl.pallas_call(
        kernel,
        out_shape=jax.ShapeDtypeStruct((nb, 1, tb), jnp.float32),
        grid_spec=pltpu.PrefetchScalarGridSpec(
            num_scalar_prefetch=0,
            grid=grid,
            in_specs=[
                pl.BlockSpec((tb, tn, D), lambda b, n: (b, n, 0)),   # streamed x
                pl.BlockSpec((1, D), lambda b, n: (0, 0)),           # gamma
                pl.BlockSpec((1, D), lambda b, n: (0, 0)),           # beta
                pl.BlockSpec((D, H), lambda b, n: (0, 0)),           # w1
                pl.BlockSpec((1, H), lambda b, n: (0, 0)),           # b1
                pl.BlockSpec((1, H), lambda b, n: (0, 0)),           # w2 (row)
                pl.BlockSpec((1, 1), lambda b, n: (0, 0)),           # b2
            ],
            out_specs=pl.BlockSpec((1, 1, tb), lambda b, n: (b, 0, 0)),
            scratch_shapes=[pltpu.VMEM((tb, _SUB, D), jnp.float32)],  # deferred pooling partials
        ),
        compiler_params=pltpu.CompilerParams(
            dimension_semantics=("parallel", "arbitrary"),
            vmem_limit_bytes=48 * 1024 * 1024,
        ),
        cost_estimate=cost,
    )(x, gamma2, beta2, w1, b1_2, w2_row, b2_2)

    return out.reshape(b_pad)[:B]   # squeeze(-1) + drop padded batch rows


def reference(x, gamma, beta, w1, b1, w2, b2):
    pooled = jnp.mean(x, axis=1)
    mu = jnp.mean(pooled, axis=-1, keepdims=True)
    var = jnp.mean((pooled - mu) ** 2, axis=-1, keepdims=True)
    xn = (pooled - mu) / jnp.sqrt(var + EPS) * gamma + beta
    h = xn @ w1 + b1
    h = 0.5 * h * (1.0 + jax.lax.erf(h * _INV_SQRT2))
    y = h @ w2 + b2
    return y[:, 0]


if __name__ == "__main__":
    # x is (batch, seq, encoder_dim); hidden_dim=256 as in the module default.
    B, N, D, H = 2, 32, 128, 256

    key = jax.random.PRNGKey(0)
    kx, kw1, kb1, kw2, kb2, kx2 = jax.random.split(key, 6)

    x = jax.random.normal(kx, (B, N, D), dtype=jnp.float32)

    # Deterministic params (LayerNorm: ones/zeros; Linear weights pre-transposed to (in, out))
    gamma = jnp.ones((D,), dtype=jnp.float32)
    beta = jnp.zeros((D,), dtype=jnp.float32)
    w1 = jax.random.uniform(kw1, (D, H), minval=-1.0, maxval=1.0) / jnp.sqrt(D)
    b1 = jax.random.uniform(kb1, (H,), minval=-1.0, maxval=1.0) / jnp.sqrt(D)
    w2 = jax.random.uniform(kw2, (H, 1), minval=-1.0, maxval=1.0) / jnp.sqrt(H)
    b2 = jax.random.uniform(kb2, (1,), minval=-1.0, maxval=1.0) / jnp.sqrt(H)

    # Case 1: force a 4-step sequence grid so the accumulator init/epilogue path is exercised.
    out = regression_head(x, gamma, beta, w1, b1, w2, b2, seq_tile=8)
    out = jax.block_until_ready(out)
    ref = reference(x, gamma, beta, w1, b1, w2, b2)
    assert out.shape == (B,)
    assert jnp.allclose(out, ref, atol=1e-4, rtol=1e-4), (out, ref)

    # Case 2: non-multiple-of-8 batch (padded to 16 -> two parallel batch tiles) + auto seq tile.
    B2, N2 = 10, 24
    x2 = jax.random.normal(kx2, (B2, N2, D), dtype=jnp.float32)
    out2 = jax.block_until_ready(regression_head(x2, gamma, beta, w1, b1, w2, b2))
    ref2 = reference(x2, gamma, beta, w1, b1, w2, b2)
    assert out2.shape == (B2,)
    assert jnp.allclose(out2, ref2, atol=1e-4, rtol=1e-4), (out2, ref2)

    print("KERNEL_OK")
</pallas_src>

<mosaic_0001>
module attributes {stable_mosaic.version = 11 : i64} {
  func.func @_regression_head_kernel(%arg0: i32, %arg1: i32, %arg2: memref<2x8x128xf32, #tpu.memory_space<vmem>>, %arg3: memref<1x128xf32, #tpu.memory_space<vmem>>, %arg4: memref<1x128xf32, #tpu.memory_space<vmem>>, %arg5: memref<128x256xf32, #tpu.memory_space<vmem>>, %arg6: memref<1x256xf32, #tpu.memory_space<vmem>>, %arg7: memref<1x256xf32, #tpu.memory_space<vmem>>, %arg8: memref<1x1xf32, #tpu.memory_space<vmem>>, %arg9: memref<1x1x2xf32, #tpu.memory_space<vmem>>, %arg10: memref<2x8x128xf32, #tpu.memory_space<vmem>>) attributes {dimension_semantics = [#tpu.dimension_semantics<parallel>, #tpu.dimension_semantics<arbitrary>], iteration_bounds = array<i64: 1, 4>, scalar_prefetch = 0 : i64, scratch_operands = 1 : i64, tpu.core_type = #tpu.core_type<tc>, window_params = [{transform_indices = @transform_0, window_bounds = array<i64: 2, 8, 128>}, {pipeline_mode = #tpu.pipeline_mode<synchronous>, transform_indices = @transform_1, window_bounds = array<i64: 1, 128>}, {pipeline_mode = #tpu.pipeline_mode<synchronous>, transform_indices = @transform_2, window_bounds = array<i64: 1, 128>}, {pipeline_mode = #tpu.pipeline_mode<synchronous>, transform_indices = @transform_3, window_bounds = array<i64: 128, 256>}, {pipeline_mode = #tpu.pipeline_mode<synchronous>, transform_indices = @transform_4, window_bounds = array<i64: 1, 256>}, {pipeline_mode = #tpu.pipeline_mode<synchronous>, transform_indices = @transform_5, window_bounds = array<i64: 1, 256>}, {pipeline_mode = #tpu.pipeline_mode<synchronous>, transform_indices = @transform_6, window_bounds = array<i64: 1, 1>}, {transform_indices = @transform_7, window_bounds = array<i64: 1, 1, 2>}]} {
    %c0_i32 = arith.constant 0 : i32
    %0 = arith.cmpi eq, %arg1, %c0_i32 : i32
    %1 = arith.extui %0 : i1 to i32
    %c0_i32_0 = arith.constant 0 : i32
    %2 = arith.cmpi ne, %1, %c0_i32_0 : i32
    scf.if %2 {
      %cst_10 = arith.constant 0.000000e+00 : f32
      %12 = vector.broadcast %cst_10 : f32 to vector<2x8x128xf32>
      %c0_11 = arith.constant 0 : index
      %c0_12 = arith.constant 0 : index
      %c0_13 = arith.constant 0 : index
      %13 = vector.load %arg10[%c0_11, %c0_12, %c0_13] : memref<2x8x128xf32, #tpu.memory_space<vmem>>, vector<2x8x128xf32>
      tpu.vector_store %arg10[%c0_11, %c0_12, %c0_13], %12 {strides = array<i32>} : memref<2x8x128xf32, #tpu.memory_space<vmem>>, vector<2x8x128xf32>,
    } else {
    }
    %c0 = arith.constant 0 : index
    %c0_1 = arith.constant 0 : index
    %c0_2 = arith.constant 0 : index
    %3 = vector.load %arg2[%c0, %c0_1, %c0_2] : memref<2x8x128xf32, #tpu.memory_space<vmem>>, vector<2x8x128xf32>
    %4 = vector.shape_cast %3 : vector<2x8x128xf32> to vector<2x1x8x128xf32>
    %c0_3 = arith.constant 0 : index
    %c0_4 = arith.constant 0 : index
    %c0_5 = arith.constant 0 : index
    %5 = vector.load %arg10[%c0_3, %c0_4, %c0_5] : memref<2x8x128xf32, #tpu.memory_space<vmem>>, vector<2x8x128xf32>
    %cst = arith.constant dense<0.000000e+00> : vector<2x8x128xf32>
    %6 = vector.multi_reduction <add>, %4, %cst [1] : vector<2x1x8x128xf32> to vector<2x8x128xf32>
    %7 = arith.addf %5, %6 : vector<2x8x128xf32>
    %c0_6 = arith.constant 0 : index
    %c0_7 = arith.constant 0 : index
    %c0_8 = arith.constant 0 : index
    %8 = vector.load %arg10[%c0_6, %c0_7, %c0_8] : memref<2x8x128xf32, #tpu.memory_space<vmem>>, vector<2x8x128xf32>
    tpu.vector_store %arg10[%c0_6, %c0_7, %c0_8], %7 {strides = array<i32>} : memref<2x8x128xf32, #tpu.memory_space<vmem>>, vector<2x8x128xf32>,
    %c3_i32 = arith.constant 3 : i32
    %9 = arith.cmpi eq, %arg1, %c3_i32 : i32
    %10 = arith.extui %9 : i1 to i32
    %c0_i32_9 = arith.constant 0 : i32
    %11 = arith.cmpi ne, %10, %c0_i32_9 : i32
    scf.if %11 {
      %c0_10 = arith.constant 0 : index
      %c0_11 = arith.constant 0 : index
      %c0_12 = arith.constant 0 : index
      %12 = vector.load %arg10[%c0_10, %c0_11, %c0_12] : memref<2x8x128xf32, #tpu.memory_space<vmem>>, vector<2x8x128xf32>
      %cst_13 = arith.constant dense<0.000000e+00> : vector<2x128xf32>
      %13 = vector.multi_reduction <add>, %12, %cst_13 [1] : vector<2x8x128xf32> to vector<2x128xf32>
      %cst_14 = arith.constant 3.125000e-02 : f32
      %14 = vector.broadcast %cst_14 : f32 to vector<2x128xf32>
      %15 = arith.mulf %13, %14 : vector<2x128xf32>
      %cst_15 = arith.constant dense<0.000000e+00> : vector<2xf32>
      %16 = vector.multi_reduction <add>, %15, %cst_15 [1] : vector<2x128xf32> to vector<2xf32>
      %17 = vector.shape_cast %16 : vector<2xf32> to vector<2x1xf32>
      %cst_16 = arith.constant 1.280000e+02 : f32
      %18 = vector.broadcast %cst_16 : f32 to vector<2x1xf32>
      %19 = arith.divf %17, %18 : vector<2x1xf32>
      %20 = vector.broadcast %19 : vector<2x1xf32> to vector<2x128xf32>
      %21 = arith.subf %15, %20 : vector<2x128xf32>
      %22 = arith.mulf %21, %21 : vector<2x128xf32>
      %cst_17 = arith.constant dense<0.000000e+00> : vector<2xf32>
      %23 = vector.multi_reduction <add>, %22, %cst_17 [1] : vector<2x128xf32> to vector<2xf32>
      %24 = vector.shape_cast %23 : vector<2xf32> to vector<2x1xf32>
      %cst_18 = arith.constant 1.280000e+02 : f32
      %25 = vector.broadcast %cst_18 : f32 to vector<2x1xf32>
      %26 = arith.divf %24, %25 : vector<2x1xf32>
      %27 = vector.broadcast %19 : vector<2x1xf32> to vector<2x128xf32>
      %28 = arith.subf %15, %27 : vector<2x128xf32>
      %cst_19 = arith.constant 9.99999974E-6 : f32
      %29 = vector.broadcast %cst_19 : f32 to vector<2x1xf32>
      %30 = arith.addf %26, %29 : vector<2x1xf32>
      %31 = math.rsqrt %30 : vector<2x1xf32>
      %32 = vector.broadcast %31 : vector<2x1xf32> to vector<2x128xf32>
      %33 = arith.mulf %28, %32 : vector<2x128xf32>
      %c0_20 = arith.constant 0 : index
      %c0_21 = arith.constant 0 : index
      %34 = vector.load %arg3[%c0_20, %c0_21] : memref<1x128xf32, #tpu.memory_space<vmem>>, vector<1x128xf32>
      %35 = vector.broadcast %34 : vector<1x128xf32> to vector<2x128xf32>
      %36 = arith.mulf %33, %35 : vector<2x128xf32>
      %c0_22 = arith.constant 0 : index
      %c0_23 = arith.constant 0 : index
      %37 = vector.load %arg4[%c0_22, %c0_23] : memref<1x128xf32, #tpu.memory_space<vmem>>, vector<1x128xf32>
      %38 = vector.broadcast %37 : vector<1x128xf32> to vector<2x128xf32>
      %39 = arith.addf %36, %38 : vector<2x128xf32>
      %c0_24 = arith.constant 0 : index
      %c0_25 = arith.constant 0 : index
      %40 = vector.load %arg5[%c0_24, %c0_25] : memref<128x256xf32, #tpu.memory_space<vmem>>, vector<128x256xf32>
      %cst_26 = arith.constant dense<0.000000e+00> : vector<2x256xf32>
      %41 = tpu.matmul %39, %40, %cst_26 {dimension_numbers = #tpu.dot_dimension_numbers<[1], [0], [0], [1], [0, 0, 1, 1], [], []>} : vector<2x128xf32>, vector<128x256xf32>, vector<2x256xf32> -> vector<2x256xf32>
      %c0_27 = arith.constant 0 : index
      %c0_28 = arith.constant 0 : index
      %42 = vector.load %arg6[%c0_27, %c0_28] : memref<1x256xf32, #tpu.memory_space<vmem>>, vector<1x256xf32>
      %43 = vector.broadcast %42 : vector<1x256xf32> to vector<2x256xf32>
      %44 = arith.addf %41, %43 : vector<2x256xf32>
      %cst_29 = arith.constant 5.000000e-01 : f32
      %45 = vector.broadcast %cst_29 : f32 to vector<2x256xf32>
      %46 = arith.mulf %45, %44 : vector<2x256xf32>
      %cst_30 = arith.constant 0.707106769 : f32
      %47 = vector.broadcast %cst_30 : f32 to vector<2x256xf32>
      %48 = arith.mulf %44, %47 : vector<2x256xf32>
      %49 = math.erf %48 : vector<2x256xf32>
      %cst_31 = arith.constant 1.000000e+00 : f32
      %50 = vector.broadcast %cst_31 : f32 to vector<2x256xf32>
      %51 = arith.addf %50, %49 : vector<2x256xf32>
      %52 = arith.mulf %46, %51 : vector<2x256xf32>
      %c0_32 = arith.constant 0 : index
      %c0_33 = arith.constant 0 : index
      %53 = vector.load %arg7[%c0_32, %c0_33] : memref<1x256xf32, #tpu.memory_space<vmem>>, vector<1x256xf32>
      %54 = vector.broadcast %53 : vector<1x256xf32> to vector<2x256xf32>
      %55 = arith.mulf %52, %54 : vector<2x256xf32>
      %cst_34 = arith.constant dense<0.000000e+00> : vector<2xf32>
      %56 = vector.multi_reduction <add>, %55, %cst_34 [1] : vector<2x256xf32> to vector<2xf32>
      %57 = vector.shape_cast %56 : vector<2xf32> to vector<2x1xf32>
      %c0_35 = arith.constant 0 : index
      %c0_36 = arith.constant 0 : index
      %58 = vector.load %arg8[%c0_35, %c0_36] : memref<1x1xf32, #tpu.memory_space<vmem>>, vector<1x1xf32>
      %59 = vector.broadcast %58 : vector<1x1xf32> to vector<2x1xf32>
      %60 = arith.addf %57, %59 : vector<2x1xf32>
      %61 = vector.shape_cast %60 : vector<2x1xf32> to vector<1x1x2xf32>
      %c0_37 = arith.constant 0 : index
      %c0_38 = arith.constant 0 : index
      %c0_39 = arith.constant 0 : index
      %62 = vector.load %arg9[%c0_37, %c0_38, %c0_39] : memref<1x1x2xf32, #tpu.memory_space<vmem>>, vector<1x1x2xf32>
      tpu.vector_store %arg9[%c0_37, %c0_38, %c0_39], %61 {strides = array<i32>} : memref<1x1x2xf32, #tpu.memory_space<vmem>>, vector<1x1x2xf32>,
    } else {
    }
    return
  }
  func.func @transform_0(%arg0: i32, %arg1: i32) -> (i32, i32, i32) {
    %c0_i32 = arith.constant 0 : i32
    %c0_i32_0 = arith.constant 0 : i32
    return %arg0, %arg1, %c0_i32 : i32, i32, i32
  }
  func.func @transform_1(%arg0: i32, %arg1: i32) -> (i32, i32) {
    %c0_i32 = arith.constant 0 : i32
    %c0_i32_0 = arith.constant 0 : i32
    %c0_i32_1 = arith.constant 0 : i32
    return %c0_i32, %c0_i32_0 : i32, i32
  }
  func.func @transform_2(%arg0: i32, %arg1: i32) -> (i32, i32) {
    %c0_i32 = arith.constant 0 : i32
    %c0_i32_0 = arith.constant 0 : i32
    %c0_i32_1 = arith.constant 0 : i32
    return %c0_i32, %c0_i32_0 : i32, i32
  }
  func.func @transform_3(%arg0: i32, %arg1: i32) -> (i32, i32) {
    %c0_i32 = arith.constant 0 : i32
    %c0_i32_0 = arith.constant 0 : i32
    %c0_i32_1 = arith.constant 0 : i32
    return %c0_i32, %c0_i32_0 : i32, i32
  }
  func.func @transform_4(%arg0: i32, %arg1: i32) -> (i32, i32) {
    %c0_i32 = arith.constant 0 : i32
    %c0_i32_0 = arith.constant 0 : i32
    %c0_i32_1 = arith.constant 0 : i32
    return %c0_i32, %c0_i32_0 : i32, i32
  }
  func.func @transform_5(%arg0: i32, %arg1: i32) -> (i32, i32) {
    %c0_i32 = arith.constant 0 : i32
    %c0_i32_0 = arith.constant 0 : i32
    %c0_i32_1 = arith.constant 0 : i32
    return %c0_i32, %c0_i32_0 : i32, i32
  }
  func.func @transform_6(%arg0: i32, %arg1: i32) -> (i32, i32) {
    %c0_i32 = arith.constant 0 : i32
    %c0_i32_0 = arith.constant 0 : i32
    %c0_i32_1 = arith.constant 0 : i32
    return %c0_i32, %c0_i32_0 : i32, i32
  }
  func.func @transform_7(%arg0: i32, %arg1: i32) -> (i32, i32, i32) {
    %c0_i32 = arith.constant 0 : i32
    %c0_i32_0 = arith.constant 0 : i32
    %c0_i32_1 = arith.constant 0 : i32
    return %arg0, %c0_i32, %c0_i32_0 : i32, i32, i32
  }
}

</mosaic_0001>

<llo_original>
// kernel: tpu_custom_call.1
$region0: #{tpu_custom_call.1}
  #allocation0 [shape = 'u32[]', space=smem, size = 0x4, offset = 0x4, fixed_abs, tag = 'smem constant byte address 0x4 - core index']
  #allocation1 [shape = 'u32[144,128]{1,0:T(1,128)}', space=vmem, size = 0x12000, scoped, tag = 'internal scratch']
  #allocation2 [shape = 'f32[2,8,128]{2,1,0:T(8,128)}', space=vmem, size = 0x2000, scoped, tag = 'scratch operand']
  #allocation3 [shape = 'f32[1,1]{1,0:T(1,128)S(1)}', space=vmem, size = 0x200, scoped, tag = 'scoped memory for tpu_custom_call.1']
  %s0 = inlined_call_operand.hbm [shape: f32[2,32,128], index: 0, kind: input, shape index: {}]
  %s1 = inlined_call_operand.vmem [shape: f32[1,128], index: 1, kind: input, shape index: {}]
  %s2 = inlined_call_operand.vmem [shape: f32[1,128], index: 2, kind: input, shape index: {}]
  %s3 = inlined_call_operand.hbm [shape: f32[128,256], index: 3, kind: input, shape index: {}]
  %s4 = inlined_call_operand.vmem [shape: f32[1,256], index: 4, kind: input, shape index: {}]
  %s5 = inlined_call_operand.vmem [shape: f32[1,256], index: 5, kind: input, shape index: {}]
  %s6 = inlined_call_operand.<no memory space> [shape: f32[1,1], index: 6, kind: input, shape index: {}]
  %s7 = inlined_call_operand.hbm [shape: f32[1,1,2], index: 7, kind: output, shape index: {}]
  %s8 = sld [smem:[#allocation0]]
  $region77: #{tpu_custom_call.1} parent=0
    _
  %s10 = ssub.s32 1, %s8
  %s11 = scalar_select 0, %s10, %s8
  %v12 = vstv %s6
  %13 = vst [vmem:[#allocation3] sm:$0x1] %v12
  $region1: #{tpu_custom_call.1} parent=0
    #allocation4 [shape = 'u8[16384]{0}', space=vmem, size = 0x4000, scoped, tag = 'input window, operand 0']
    #allocation5 [shape = 's32[2]{0}', space=sflag, size = 0x8, scoped, tag = 'scoped memory for tpu_custom_call.1']
    #allocation6 [shape = 's32[2]{0}', space=sflag, size = 0x8, scoped, tag = 'scoped memory for tpu_custom_call.1']
    #allocation7 [shape = 'u8[131072]{0}', space=vmem, size = 0x20000, scoped, tag = 'input window, operand 3, single buffered']
    #allocation8 [shape = 's32[1]{0}', space=sflag, size = 0x4, scoped, tag = 'scoped memory for tpu_custom_call.1']
    #allocation9 [shape = 'u8[512]{0}', space=vmem, size = 0x400, scoped, tag = 'output window, operand 0, single buffered']
    %14 = vsyncpa [#allocation5], 0
    %s15 = scalar_lea.sflag [#allocation5], 1
    %16 = vsyncpa %s15, 0
    %17 = vsyncpa [#allocation8], 0
    %18 = vsyncpa [#allocation6], 0
    loop: start=0, step=1, limit=6
    $region2: #{tpu_custom_call.1} parent=1 // loop_pre_header
      _
    $region3: #{tpu_custom_call.1} parent=1 // loop_header
      %s20 = sphi 0, %s24
      %p21 = scmp.ge.s32.totalorder %s20, 6
      %s27 = sphi 0, %s39
      %s28 = sphi 0, %s35
      %s29 = sphi 0, %s27
      %s30 = sphi 0, %s28
      %s31 = sphi 0, %s29
      %s32 = sphi 0, %s30
      %s44 = sphi 0, %s46
      %s47 = sphi 0, %s44
      %s48 = sphi 0, %s47
      %s64 = sphi 0, %s48
      %s68 = sphi 0, %s68
      %s70 = sphi 0, %s68
      %s71 = sphi 0, %s70
      %s85 = sphi 0, %s71
      %s89 = sphi 0, %s89
      %s91 = sphi 0, %s89
      %s92 = sphi 0, %s91
      %s106 = sphi 0, %s92
      %s110 = sphi 0, %s110
      %s112 = sphi 0, %s110
      %s113 = sphi 0, %s112
      %s127 = sphi 0, %s113
      %s131 = sphi 0, %s131
      %s133 = sphi 0, %s131
      %s134 = sphi 0, %s133
      %s148 = sphi 0, %s134
      %s152 = sphi 0, %s152
      %s154 = sphi 0, %s152
      %s155 = sphi 0, %s154
      %s169 = sphi 0, %s155
      %s173 = sphi 0, %s173
      %s175 = sphi 0, %s173
      %s176 = sphi 0, %s175
      %s190 = sphi 0, %s176
      %s196 = sphi 0, %s198
      %s199 = sphi 0, %s196
      %s200 = sphi 0, %s199
      %s216 = sphi 0, %s200
    $region4: #{tpu_custom_call.1} parent=1 // loop_header_branch
      %23 = sbr.rel (%p21) target = $region8
    $region5: #{tpu_custom_call.1} parent=1 // loop_body
      %s25 = ssub.s32 %s20, 1
      %s26 = ssub.s32 %s20, 2
      %s33 = sadd.s32 1, %s28
      %p34 = scmp.ge.s32.totalorder %s33, 4
      %s35 = scalar_select %p34, 0, %s33
      %s36 = sadd.s32 1, %s27
      %s37 = scalar_select %p34, %s36, %s27
      %p38 = scmp.ge.s32.totalorder %s37, 1
      %s39 = scalar_select %p38, 0, %s37
      %s40 = ssub.s32 %s27, %s39
      %s41 = ssub.s32 %s28, %s35
      %s42 = sor.u32 %s40, %s41
      %p43 = scmp.eq.s32.totalorder %s42, 0
      %s45 = sadd.s32 %s44, 1
      %s46 = scalar_select %p43, %s44, %s45
      %p49 = pneg %p43
      %p50 = scmp.eq.s32.totalorder %s20, 3
      %p51 = por %p49, %p50
      %p52 = scmp.ne.s32.totalorder %s44, %s47
      %p53 = scmp.eq.s32.totalorder %s20, 0
      %p54 = por %p52, %p53
      %p55 = scmp.ne.s32.totalorder %s44, %s47
      %p56 = scmp.eq.s32.totalorder %s25, 3
      %p57 = por %p55, %p56
      %p58 = scmp.ne.s32.totalorder %s47, %s48
      %p59 = scmp.eq.s32.totalorder %s25, 0
      %p60 = por %p58, %p59
      %p61 = scmp.ne.s32.totalorder %s47, %s48
      %p62 = scmp.eq.s32.totalorder %s26, 3
      %p63 = por %p61, %p62
      %p65 = scmp.ne.s32.totalorder %s48, %s64
      %p66 = scmp.eq.s32.totalorder %s26, 0
      %p67 = por %p65, %p66
      %s69 = sadd.s32 %s68, 1
      %p72 = scmp.eq.s32.totalorder %s20, 3
      %p73 = scmp.ne.s32.totalorder %s68, %s70
      %p74 = scmp.eq.s32.totalorder %s20, 0
      %p75 = por %p73, %p74
      %p76 = scmp.ne.s32.totalorder %s68, %s70
      %p77 = scmp.eq.s32.totalorder %s25, 3
      %p78 = por %p76, %p77
      %p79 = scmp.ne.s32.totalorder %s70, %s71
      %p80 = scmp.eq.s32.totalorder %s25, 0
      %p81 = por %p79, %p80
      %p82 = scmp.ne.s32.totalorder %s70, %s71
      %p83 = scmp.eq.s32.totalorder %s26, 3
      %p84 = por %p82, %p83
      %p86 = scmp.ne.s32.totalorder %s71, %s85
      %p87 = scmp.eq.s32.totalorder %s26, 0
      %p88 = por %p86, %p87
      %s90 = sadd.s32 %s89, 1
      %p93 = scmp.eq.s32.totalorder %s20, 3
      %p94 = scmp.ne.s32.totalorder %s89, %s91
      %p95 = scmp.eq.s32.totalorder %s20, 0
      %p96 = por %p94, %p95
      %p97 = scmp.ne.s32.totalorder %s89, %s91
      %p98 = scmp.eq.s32.totalorder %s25, 3
      %p99 = por %p97, %p98
      %p100 = scmp.ne.s32.totalorder %s91, %s92
      %p101 = scmp.eq.s32.totalorder %s25, 0
      %p102 = por %p100, %p101
      %p103 = scmp.ne.s32.totalorder %s91, %s92
      %p104 = scmp.eq.s32.totalorder %s26, 3
      %p105 = por %p103, %p104
      %p107 = scmp.ne.s32.totalorder %s92, %s106
      %p108 = scmp.eq.s32.totalorder %s26, 0
      %p109 = por %p107, %p108
      %s111 = sadd.s32 %s110, 1
      %p114 = scmp.eq.s32.totalorder %s20, 3
      %p115 = scmp.ne.s32.totalorder %s110, %s112
      %p116 = scmp.eq.s32.totalorder %s20, 0
      %p117 = por %p115, %p116
      %p118 = scmp.ne.s32.totalorder %s110, %s112
      %p119 = scmp.eq.s32.totalorder %s25, 3
      %p120 = por %p118, %p119
      %p121 = scmp.ne.s32.totalorder %s112, %s113
      %p122 = scmp.eq.s32.totalorder %s25, 0
      %p123 = por %p121, %p122
      %p124 = scmp.ne.s32.totalorder %s112, %s113
      %p125 = scmp.eq.s32.totalorder %s26, 3
      %p126 = por %p124, %p125
      %p128 = scmp.ne.s32.totalorder %s113, %s127
      %p129 = scmp.eq.s32.totalorder %s26, 0
      %p130 = por %p128, %p129
      %s132 = sadd.s32 %s131, 1
      %p135 = scmp.eq.s32.totalorder %s20, 3
      %p136 = scmp.ne.s32.totalorder %s131, %s133
      %p137 = scmp.eq.s32.totalorder %s20, 0
      %p138 = por %p136, %p137
      %p139 = scmp.ne.s32.totalorder %s131, %s133
      %p140 = scmp.eq.s32.totalorder %s25, 3
      %p141 = por %p139, %p140
      %p142 = scmp.ne.s32.totalorder %s133, %s134
      %p143 = scmp.eq.s32.totalorder %s25, 0
      %p144 = por %p142, %p143
      %p145 = scmp.ne.s32.totalorder %s133, %s134
      %p146 = scmp.eq.s32.totalorder %s26, 3
      %p147 = por %p145, %p146
      %p149 = scmp.ne.s32.totalorder %s134, %s148
      %p150 = scmp.eq.s32.totalorder %s26, 0
      %p151 = por %p149, %p150
      %s153 = sadd.s32 %s152, 1
      %p156 = scmp.eq.s32.totalorder %s20, 3
      %p157 = scmp.ne.s32.totalorder %s152, %s154
      %p158 = scmp.eq.s32.totalorder %s20, 0
      %p159 = por %p157, %p158
      %p160 = scmp.ne.s32.totalorder %s152, %s154
      %p161 = scmp.eq.s32.totalorder %s25, 3
      %p162 = por %p160, %p161
      %p163 = scmp.ne.s32.totalorder %s154, %s155
      %p164 = scmp.eq.s32.totalorder %s25, 0
      %p165 = por %p163, %p164
      %p166 = scmp.ne.s32.totalorder %s154, %s155
      %p167 = scmp.eq.s32.totalorder %s26, 3
      %p168 = por %p166, %p167
      %p170 = scmp.ne.s32.totalorder %s155, %s169
      %p171 = scmp.eq.s32.totalorder %s26, 0
      %p172 = por %p170, %p171
      %s174 = sadd.s32 %s173, 1
      %p177 = scmp.eq.s32.totalorder %s20, 3
      %p178 = scmp.ne.s32.totalorder %s173, %s175
      %p179 = scmp.eq.s32.totalorder %s20, 0
      %p180 = por %p178, %p179
      %p181 = scmp.ne.s32.totalorder %s173, %s175
      %p182 = scmp.eq.s32.totalorder %s25, 3
      %p183 = por %p181, %p182
      %p184 = scmp.ne.s32.totalorder %s175, %s176
      %p185 = scmp.eq.s32.totalorder %s25, 0
      %p186 = por %p184, %p185
      %p187 = scmp.ne.s32.totalorder %s175, %s176
      %p188 = scmp.eq.s32.totalorder %s26, 3
      %p189 = por %p187, %p188
      %p191 = scmp.ne.s32.totalorder %s176, %s190
      %p192 = scmp.eq.s32.totalorder %s26, 0
      %p193 = por %p191, %p192
      %s194 = ssub.s32 %s27, %s39
      %p195 = scmp.eq.s32.totalorder %s194, 0
      %s197 = sadd.s32 %s196, 1
      %s198 = scalar_select %p195, %s196, %s197
      %p201 = pneg %p195
      %p202 = scmp.eq.s32.totalorder %s20, 3
      %p203 = por %p201, %p202
      %p204 = scmp.ne.s32.totalorder %s196, %s199
      %p205 = scmp.eq.s32.totalorder %s20, 0
      %p206 = por %p204, %p205
      %p207 = scmp.ne.s32.totalorder %s196, %s199
      %p208 = scmp.eq.s32.totalorder %s25, 3
      %p209 = por %p207, %p208
      %p210 = scmp.ne.s32.totalorder %s199, %s200
      %p211 = scmp.eq.s32.totalorder %s25, 0
      %p212 = por %p210, %p211
      %p213 = scmp.ne.s32.totalorder %s199, %s200
      %p214 = scmp.eq.s32.totalorder %s26, 3
      %p215 = por %p213, %p214
      %p217 = scmp.ne.s32.totalorder %s200, %s216
      %p218 = scmp.eq.s32.totalorder %s26, 0
      %p219 = por %p217, %p218
      %p220 = scmp.le.s32.totalorder 1, %s20
      %p221 = scmp.lt.s32.totalorder %s20, 5
      %p222 = pnand %p220, %p221
      %p223 = pneg %p222
      // Predicated region
      $region9: #{tpu_custom_call.1} parent=5 // pred_check
        _
      $region10: #{tpu_custom_call.1} parent=5 // pred_check_branch
        %225 = sbr.rel (%p222) target = $region12
      $region11: #{tpu_custom_call.1} parent=5 // pred_region
        %s226 = ssub.s32 %s20, 1
        // Predicated region
        $region13: #{tpu_custom_call.1} parent=11 // pred_check
          %p227 = pneg %p81
        $region14: #{tpu_custom_call.1} parent=11 // pred_check_branch
          %229 = sbr.rel (%p227) target = $region16
        $region15: #{tpu_custom_call.1} parent=11 // pred_region
          _
        $region16: #{tpu_custom_call.1} parent=11 // pred_fallthru
          _
        // Predicated region
        $region17: #{tpu_custom_call.1} parent=11 // pred_check
          %p230 = pneg %p102
        $region18: #{tpu_custom_call.1} parent=11 // pred_check_branch
          %232 = sbr.rel (%p230) target = $region20
        $region19: #{tpu_custom_call.1} parent=11 // pred_region
          _
        $region20: #{tpu_custom_call.1} parent=11 // pred_fallthru
          _
        // Predicated region
        $region21: #{tpu_custom_call.1} parent=11 // pred_check
          %p233 = pneg %p123
        $region22: #{tpu_custom_call.1} parent=11 // pred_check_branch
          %235 = sbr.rel (%p233) target = $region24
        $region23: #{tpu_custom_call.1} parent=11 // pred_region
          %s237 = ssub.s32 4096, 4096
          %238 = vsyncadd [#allocation8], %s237
          %s239 = sshll.u32 [#allocation7], 4
          %s240 = int_to_ptr.vmem [resolvable:$true] %s239
          %245 = dma.hbm_to_vmem [thread:$0]  %s3, 4096, %s240, [#allocation8], 256, 256, 16
        $region24: #{tpu_custom_call.1} parent=11 // pred_fallthru
          _
        // Predicated region
        $region25: #{tpu_custom_call.1} parent=11 // pred_check
          %p246 = pneg %p144
        $region26: #{tpu_custom_call.1} parent=11 // pred_check_branch
          %248 = sbr.rel (%p246) target = $region28
        $region27: #{tpu_custom_call.1} parent=11 // pred_region
          _
        $region28: #{tpu_custom_call.1} parent=11 // pred_fallthru
          _
        // Predicated region
        $region29: #{tpu_custom_call.1} parent=11 // pred_check
          %p249 = pneg %p165
        $region30: #{tpu_custom_call.1} parent=11 // pred_check_branch
          %251 = sbr.rel (%p249) target = $region32
        $region31: #{tpu_custom_call.1} parent=11 // pred_region
          _
        $region32: #{tpu_custom_call.1} parent=11 // pred_fallthru
          _
        // Predicated region
        $region33: #{tpu_custom_call.1} parent=11 // pred_check
          %p252 = pneg %p186
        $region34: #{tpu_custom_call.1} parent=11 // pred_check_branch
          %254 = sbr.rel (%p252) target = $region36
        $region35: #{tpu_custom_call.1} parent=11 // pred_region
          _
        $region36: #{tpu_custom_call.1} parent=11 // pred_fallthru
          _
      $region12: #{tpu_custom_call.1} parent=5 // pred_fallthru
        _
      %p255 = scmp.lt.s32.totalorder %s20, 4
      // Predicated region
      $region37: #{tpu_custom_call.1} parent=5 // pred_check
        %p256 = pneg %p255
      $region38: #{tpu_custom_call.1} parent=5 // pred_check_branch
        %258 = sbr.rel (%p256) target = $region40
      $region39: #{tpu_custom_call.1} parent=5 // pred_region
        // Predicated region
        $region41: #{tpu_custom_call.1} parent=39 // pred_check
          %p259 = pneg %p54
        $region42: #{tpu_custom_call.1} parent=39 // pred_check_branch
          %261 = sbr.rel (%p259) target = $region44
        $region43: #{tpu_custom_call.1} parent=39 // pred_region
          %s262 = sand.u32 %s44, 1
          %s263 = scalar_lea.sflag [#allocation5], %s262
          %s264 = sand.u32 %s44, 1
          %s265 = smul.addr %s264, 16
          %s266 = scalar_lea.vmem [#allocation4], %s265
          %s267 = smul.u32 2, %s27
          %s269 = ssub.s32 256, 256
          %270 = vsyncadd %s263, %s269
          %s271 = smul.addr %s267, 4
          %s272 = sadd.s32 %s28, %s271
          %s273 = smul.addr %s272, 128
          %s274 = scalar_lea.hbm %s0, %s273
          %s275 = sshll.u32 %s266, 4
          %s276 = int_to_ptr.vmem [resolvable:$true] %s275
          %281 = dma.hbm_to_vmem [thread:$0]  %s274, 256, %s276, %s263, 512, 128, 8
        $region44: #{tpu_custom_call.1} parent=39 // pred_fallthru
          _
      $region40: #{tpu_custom_call.1} parent=5 // pred_fallthru
        _
      %p282 = scmp.le.s32.totalorder 1, %s20
      %p283 = scmp.lt.s32.totalorder %s20, 5
      %p284 = pnand %p282, %p283
      %p285 = pneg %p284
      // Predicated region
      $region45: #{tpu_custom_call.1} parent=5 // pred_check
        _
      $region46: #{tpu_custom_call.1} parent=5 // pred_check_branch
        %287 = sbr.rel (%p284) target = $region48
      $region47: #{tpu_custom_call.1} parent=5 // pred_region
        %s288 = ssub.s32 %s20, 1
        %s289 = sand.u32 %s47, 1
        %s290 = scalar_lea.sflag [#allocation5], %s289
        %s291 = sand.u32 %s47, 1
        %s292 = smul.addr %s291, 16
        %s293 = scalar_lea.vmem [#allocation4], %s292
        // Predicated region
        $region49: #{tpu_custom_call.1} parent=47 // pred_check
          %p294 = pneg %p60
        $region50: #{tpu_custom_call.1} parent=47 // pred_check_branch
          %296 = sbr.rel (%p294) target = $region52
        $region51: #{tpu_custom_call.1} parent=47 // pred_region
          %297 = dma.done %s290, 256
        $region52: #{tpu_custom_call.1} parent=47 // pred_fallthru
          _
        // Predicated region
        $region53: #{tpu_custom_call.1} parent=47 // pred_check
          %p298 = pneg %p123
        $region54: #{tpu_custom_call.1} parent=47 // pred_check_branch
          %300 = sbr.rel (%p298) target = $region56
        $region55: #{tpu_custom_call.1} parent=47 // pred_region
          %301 = dma.done [#allocation8], 4096
        $region56: #{tpu_custom_call.1} parent=47 // pred_fallthru
          _
        %s302 = sand.u32 %s47, 1
        %s303 = scalar_lea.sflag [#allocation5], %s302
        %s304 = sand.u32 %s47, 1
        %s305 = smul.addr %s304, 16
        %s306 = scalar_lea.vmem [#allocation4], %s305
        %p307 = pneg %p60
        %p308 = pneg %p57
        %p309 = pneg %p81
        %p310 = pneg %p78
        %p311 = pneg %p102
        %p312 = pneg %p99
        %p313 = pneg %p123
        %p314 = pneg %p120
        %p315 = pneg %p144
        %p316 = pneg %p141
        %p317 = pneg %p165
        %p318 = pneg %p162
        %p319 = pneg %p186
        %p320 = pneg %p183
        %p321 = pneg %p212
        %p322 = pneg %p209
        %s323 = smul.u32 2, %s29
        %p324 = scmp.eq.s32.totalorder %s30, 0
        // Predicated region
        $region57: #{tpu_custom_call.1} parent=47 // pred_check
          %p325 = pneg %p324
        $region58: #{tpu_custom_call.1} parent=47 // pred_check_branch
          %327 = sbr.rel (%p325) target = $region60
        $region59: #{tpu_custom_call.1} parent=47 // pred_region
          %328 = vst [vmem:[#allocation2] sm:$0xff] 0.0
          %329 = vst [vmem:[#allocation2 + $0x8] sm:$0xff] 0.0
        $region60: #{tpu_custom_call.1} parent=47 // pred_fallthru
          _
        %v330 = vld [vmem:[%s293] sm:$0xff]
        %v331 = vld [vmem:[%s293 + $0x8] sm:$0xff]
        %v332 = vld [vmem:[#allocation2] sm:$0xff]
        %v333 = vld [vmem:[#allocation2 + $0x8] sm:$0xff]
        %v334 = vadd.f32 %v330, 0.0
        %v335 = vadd.f32 %v331, 0.0
        %v336 = vadd.f32 %v332, %v334
        %v337 = vadd.f32 %v333, %v335
        %338 = vst [vmem:[#allocation2] sm:$0xff] %v336
        %339 = vst [vmem:[#allocation2 + $0x8] sm:$0xff] %v337
        %p340 = scmp.eq.s32.totalorder %s30, 3
        // Predicated region
        $region61: #{tpu_custom_call.1} parent=47 // pred_check
          %p341 = pneg %p340
        $region62: #{tpu_custom_call.1} parent=47 // pred_check_branch
          %343 = sbr.rel (%p341) target = $region64
        $region63: #{tpu_custom_call.1} parent=47 // pred_region
          %v344 = vld [vmem:[#allocation2] sm:$0xff]
          %v345 = vld [vmem:[#allocation2 + $0x8] sm:$0xff]
          %v346 = vrot.slane %v344, 4
          %v347 = vadd.f32 %v344, %v346
          %v348 = vrot.slane %v347, 2
          %v349 = vadd.f32 %v347, %v348
          %v350 = vrot.slane %v349, 1
          %v351 = vadd.f32 %v349, %v350
          %v352 = vrot.slane %v345, 4
          %v353 = vadd.f32 %v345, %v352
          %v354 = vrot.slane %v353, 2
          %v355 = vadd.f32 %v353, %v354
          %v356 = vrot.slane %v355, 1
          %v357 = vadd.f32 %v355, %v356
          %v358 = vmul.f32 %v351, 0.03125
          %v359 = vmul.f32 %v357, 0.03125
          %vm362 = vcmask 1041409
          %v363 = vsel %vm362, %v359, %v358
          %vm365 = vcmask 1041408
          %v366 = vsel %vm365, %v363, 0.0
          %367 = vadd.xlane.f32.xlu0 %v366
          %v368 = vpop.xlane.xlu0 %367
          %v369 = vrcp.pop 128.0
          %v370 = vmul.f32 %v368, %v369
          %v372 = vrot.slane %v370, 1
          %v375 = vsub.f32 %v358, %v370
          %v376 = vsub.f32 %v359, %v372
          %v377 = vmul.f32 %v375, %v375
          %v378 = vmul.f32 %v376, %v376
          %v381 = vrot.slane %v378, 7
          %v382 = vsel %vm362, %v381, %v377
          %v384 = vsel %vm365, %v382, 0.0
          %385 = vadd.xlane.f32.xlu0 %v384
          %v386 = vpop.xlane.xlu0 %385
          %v387 = vmul.f32 %v386, %v369
          %v388 = vadd.f32 %v387, 1e-05
          %v389 = vrsqrt.pop %v388
          %v391 = vrot.slane %v389, 1
          %v394 = vmul.f32 %v375, %v389
          %v395 = vmul.f32 %v376, %v391
          %v396 = vld [vmem:[%s1] sm:$0x1]
          %v398 = vlaneseq
          %v399 = vshrl.u32 %v398, 7
          %v400 = vsub.s32 0, %v399
          %v401 = vrot.slane %v396, %v400
          %v403 = vmul.f32 %v394, %v401
          %v404 = vmul.f32 %v395, %v401
          %v405 = vld [vmem:[%s2] sm:$0x1]
          %v407 = vlaneseq
          %v408 = vshrl.u32 %v407, 7
          %v409 = vsub.s32 0, %v408
          %v410 = vrot.slane %v405, %v409
          %v412 = vadd.f32 %v403, %v410
          %v413 = vadd.f32 %v404, %v410
          %v414 = vld [vmem:[#allocation7] sm:$0xff]
          %v415 = vld [vmem:[#allocation7 + $0x8] sm:$0xff]
          %v416 = vld [vmem:[#allocation7 + $0x10] sm:$0xff]
          %v417 = vld [vmem:[#allocation7 + $0x18] sm:$0xff]
          %v418 = vld [vmem:[#allocation7 + $0x20] sm:$0xff]
          %v419 = vld [vmem:[#allocation7 + $0x28] sm:$0xff]
          %v420 = vld [vmem:[#allocation7 + $0x30] sm:$0xff]
          %v421 = vld [vmem:[#allocation7 + $0x38] sm:$0xff]
          %v422 = vld [vmem:[#allocation7 + $0x40] sm:$0xff]
          %v423 = vld [vmem:[#allocation7 + $0x48] sm:$0xff]
          %v424 = vld [vmem:[#allocation7 + $0x50] sm:$0xff]
          %v425 = vld [vmem:[#allocation7 + $0x58] sm:$0xff]
          %v426 = vld [vmem:[#allocation7 + $0x60] sm:$0xff]
          %v427 = vld [vmem:[#allocation7 + $0x68] sm:$0xff]
          %v428 = vld [vmem:[#allocation7 + $0x70] sm:$0xff]
          %v429 = vld [vmem:[#allocation7 + $0x78] sm:$0xff]
          %v430 = vld [vmem:[#allocation7 + $0x80] sm:$0xff]
          %v431 = vld [vmem:[#allocation7 + $0x88] sm:$0xff]
          %v432 = vld [vmem:[#allocation7 + $0x90] sm:$0xff]
          %v433 = vld [vmem:[#allocation7 + $0x98] sm:$0xff]
          %v434 = vld [vmem:[#allocation7 + $0xa0] sm:$0xff]
          %v435 = vld [vmem:[#allocation7 + $0xa8] sm:$0xff]
          %v436 = vld [vmem:[#allocation7 + $0xb0] sm:$0xff]
          %v437 = vld [vmem:[#allocation7 + $0xb8] sm:$0xff]
          %v438 = vld [vmem:[#allocation7 + $0xc0] sm:$0xff]
          %v439 = vld [vmem:[#allocation7 + $0xc8] sm:$0xff]
          %v440 = vld [vmem:[#allocation7 + $0xd0] sm:$0xff]
          %v441 = vld [vmem:[#allocation7 + $0xd8] sm:$0xff]
          %v442 = vld [vmem:[#allocation7 + $0xe0] sm:$0xff]
          %v443 = vld [vmem:[#allocation7 + $0xe8] sm:$0xff]
          %v444 = vld [vmem:[#allocation7 + $0xf0] sm:$0xff]
          %v445 = vld [vmem:[#allocation7 + $0xf8] sm:$0xff]
          %v446 = vld [vmem:[%s4] sm:$0x3]
          %v448 = vlaneseq
          %v449 = vshrl.u32 %v448, 7
          %v450 = vsub.s32 0, %v449
          %v451 = vrot.slane %v446, %v450
          %v452 = vlaneseq
          %v453 = vshrl.u32 %v452, 7
          %v454 = vsub.s32 1, %v453
          %v455 = vrot.slane %v446, %v454
          %v460 = vrot.slane %v413, 7
          %v461 = vsel %vm362, %v460, %v412
          %463 = vmatprep.subr.mxu0 %v415
          %464 = vmatpush1.msra.mxu0 %v414
          %465 = vmatprep.subr.mxu0 %v417
          %466 = vmatpush1.msra.mxu0 %v416
          %467 = vmatprep.subr.mxu0 %v419
          %468 = vmatpush1.msra.mxu0 %v418
          %469 = vmatprep.subr.mxu0 %v421
          %470 = vmatpush1.msra.mxu0 %v420
          %471 = vmatprep.subr.mxu0 %v423
          %472 = vmatpush1.msra.mxu0 %v422
          %473 = vmatprep.subr.mxu0 %v425
          %474 = vmatpush1.msra.mxu0 %v424
          %475 = vmatprep.subr.mxu0 %v427
          %476 = vmatpush1.msra.mxu0 %v426
          %477 = vmatprep.subr.mxu0 %v429
          %478 = vmatpush1.msra.mxu0 %v428
          %479 = vmatprep.subr.mxu0 %v431
          %480 = vmatpush1.msra.mxu0 %v430
          %481 = vmatprep.subr.mxu0 %v433
          %482 = vmatpush1.msra.mxu0 %v432
          %483 = vmatprep.subr.mxu0 %v435
          %484 = vmatpush1.msra.mxu0 %v434
          %485 = vmatprep.subr.mxu0 %v437
          %486 = vmatpush1.msra.mxu0 %v436
          %487 = vmatprep.subr.mxu0 %v439
          %488 = vmatpush1.msra.mxu0 %v438
          %489 = vmatprep.subr.mxu0 %v441
          %490 = vmatpush1.msra.mxu0 %v440
          %491 = vmatprep.subr.mxu0 %v443
          %492 = vmatpush1.msra.mxu0 %v442
          %493 = vmatprep.subr.mxu0 %v445
          %494 = vmatpush1.msra.mxu0 %v444
          %495 = vmatprep.subr.mxu0 0.0
          %496 = vmatpush1.msra.mxu0 0.0
          %497 = vmatprep.subr.mxu0 0.0
          %498 = vmatpush1.msra.mxu0 0.0
          %499 = vmatprep.subr.mxu0 0.0
          %500 = vmatpush1.msra.mxu0 0.0
          %501 = vmatprep.subr.mxu0 0.0
          %502 = vmatpush1.msra.mxu0 0.0
          %503 = vmatprep.subr.mxu0 0.0
          %504 = vmatpush1.msra.mxu0 0.0
          %505 = vmatprep.subr.mxu0 0.0
          %506 = vmatpush1.msra.mxu0 0.0
          %507 = vmatprep.subr.mxu0 0.0
          %508 = vmatpush1.msra.mxu0 0.0
          %509 = vmatprep.subr.mxu0 0.0
          %510 = vmatpush1.msra.mxu0 0.0
          %511 = vmatprep.subr.mxu0 0.0
          %512 = vmatpush1.msra.mxu0 0.0
          %513 = vmatprep.subr.mxu0 0.0
          %514 = vmatpush1.msra.mxu0 0.0
          %515 = vmatprep.subr.mxu0 0.0
          %516 = vmatpush1.msra.mxu0 0.0
          %517 = vmatprep.subr.mxu0 0.0
          %518 = vmatpush1.msra.mxu0 0.0
          %519 = vmatprep.subr.mxu0 0.0
          %520 = vmatpush1.msra.mxu0 0.0
          %521 = vmatprep.subr.mxu0 0.0
          %522 = vmatpush1.msra.mxu0 0.0
          %523 = vmatprep.subr.mxu0 0.0
          %524 = vmatpush1.msra.mxu0 0.0
          %525 = vmatprep.subr.mxu0 0.0
          %526 = vmatpush1.msra.mxu0 0.0
          %527 = vmatprep.mubr.f32.mxu0 0.0
          %528 = vmatmul.mubr.f32.gmra.mrb[0].mxu0 %v461
          %v529 = vpop.f32.mrb[0].mxu0
          %v530 = vadd.f32 %v451, %v529
          %v531 = vpop.f32.mrb[0].mxu0
          %v532 = vadd.f32 %v455, %v531
          %533 = vdwg.mxu0
          %v534 = vmul.f32 %v530, 0.5
          %v535 = vmul.f32 %v532, 0.5
          %v536 = vmul.f32 %v530, 0.70710677
          %v537 = vmul.f32 %v532, 0.70710677
          %v538 = verf.f32.pop %v536
          %v539 = verf.f32.pop %v537
          %v540 = vadd.f32 %v538, 1.0
          %v541 = vadd.f32 %v539, 1.0
          %v542 = vmul.f32 %v534, %v540
          %v543 = vmul.f32 %v535, %v541
          %v544 = vld [vmem:[%s5] sm:$0x3]
          %v546 = vlaneseq
          %v547 = vshrl.u32 %v546, 7
          %v548 = vsub.s32 0, %v547
          %v549 = vrot.slane %v544, %v548
          %v550 = vlaneseq
          %v551 = vshrl.u32 %v550, 7
          %v552 = vsub.s32 1, %v551
          %v553 = vrot.slane %v544, %v552
          %v556 = vmul.f32 %v542, %v549
          %v557 = vmul.f32 %v543, %v553
          %v558 = vsel %vm365, %v556, 0.0
          %v559 = vsel %vm365, %v557, 0.0
          %v560 = vadd.f32 %v558, %v559
          %561 = vadd.xlane.f32.xlu0 %v560
          %v562 = vpop.xlane.xlu0 %561
          %v563 = vld [vmem:[#allocation3] sm:$0x1]
          %v565 = vlaneseq
          %v566 = vshrl.u32 %v565, 7
          %v567 = vsub.s32 0, %v566
          %v568 = vrot.slane %v563, %v567
          %v570 = vadd.f32 %v562, %v568
          %572 = vset.pattern.permute.xlu0 0
          %573 = vperm.xlu0 %572, %v570
          %v574 = vpop.permute.xlu0 %573
          %v575 = vlaneseq
          %v576 = vand.u32 %v575, 127
          %v577 = vlaneseq
          %v578 = vshrl.u32 %v577, 7
          %v579 = vsub.s32 %v576, %v578
          %v580 = vrot.slane %v574, %v579
          %vm582 = vcmask 8192
          %583 = vst.msk [vmem:[#allocation9] sm:$0x1] %vm582, %v580
        $region64: #{tpu_custom_call.1} parent=47 // pred_fallthru
          _
        // Predicated region
        $region65: #{tpu_custom_call.1} parent=47 // pred_check
          %p584 = pneg %p209
        $region66: #{tpu_custom_call.1} parent=47 // pred_check_branch
          %586 = sbr.rel (%p584) target = $region68
        $region67: #{tpu_custom_call.1} parent=47 // pred_region
          %s588 = ssub.s32 16, 16
          %589 = vsyncadd [#allocation6], %s588
          %s590 = smul.addr %s29, 16
          %s591 = scalar_lea.hbm %s7, %s590
          %s593 = sshll.u32 [#allocation9], 4
          %s594 = int_to_ptr.vmem [resolvable:$true] %s593
          %596 = dma.vmem_to_hbm [thread:$0]  %s594, 16, %s591, [#allocation6]
        $region68: #{tpu_custom_call.1} parent=47 // pred_fallthru
          _
        // Predicated region
        $region69: #{tpu_custom_call.1} parent=47 // pred_check
          %p597 = pneg %p209
        $region70: #{tpu_custom_call.1} parent=47 // pred_check_branch
          %599 = sbr.rel (%p597) target = $region72
        $region71: #{tpu_custom_call.1} parent=47 // pred_region
          %600 = dma.done [#allocation6], 16
        $region72: #{tpu_custom_call.1} parent=47 // pred_fallthru
          _
      $region48: #{tpu_custom_call.1} parent=5 // pred_fallthru
        _
      %p601 = scmp.le.s32.totalorder 2, %s20
      // Predicated region
      $region73: #{tpu_custom_call.1} parent=5 // pred_check
        %p602 = pneg %p601
      $region74: #{tpu_custom_call.1} parent=5 // pred_check_branch
        %604 = sbr.rel (%p602) target = $region76
      $region75: #{tpu_custom_call.1} parent=5 // pred_region
        %s605 = ssub.s32 %s20, 2
      $region76: #{tpu_custom_call.1} parent=5 // pred_fallthru
        _
    $region6: #{tpu_custom_call.1} parent=1 // loop_footer
      %s24 = sadd.s32 1, %s20
    $region7: #{tpu_custom_call.1} parent=1 // loop_footer_branch
      %19 = sbr.rel target = $region3
    $region8: #{tpu_custom_call.1} parent=1 // loop_exit
      _
    %606 = vsyncpa [#allocation5], 1
    %s607 = scalar_lea.sflag [#allocation5], 1
    %608 = vsyncpa %s607, 1
    %609 = vsyncpa [#allocation8], 1
    %610 = vsyncpa [#allocation6], 1
    %s611 = scalar_lea.sflag [#allocation6], 1
    %612 = vsyncpa %s611, 1

</llo_original>
